<compile_context>
chip_gen: v6e
topology: v6e:2x2x1
jax: 0.10.0
libtpu: 0.0.40
codegen_flags: <defaults>
</compile_context>

<pallas_src>
import functools

import numpy as np
import jax
import jax.numpy as jnp
from jax.experimental import pallas as pl
from jax.experimental.pallas import tpu as pltpu


_LANE = 128
# Conservative cross-generation scoped-VMEM budget (v5e default 16 MiB,
# v6e/v7x 32 MiB; v7x physical VMEM is only 64 MiB).
_VMEM_BUDGET_BYTES = 12 * 1024 * 1024


def _round_up(v, m):
    return -(-v // m) * m


def _padded_block_bytes(rows, cols, itemsize):
    """VMEM footprint of a (rows, cols) block after (sublane, 128) padding."""
    sublane = (8 * 4) // itemsize          # 8 for f32, 16 for bf16, 32 for int8
    return _round_up(rows, sublane) * _round_up(cols, _LANE) * itemsize


# ----------------------------------------------------------------------------
# Kernels
# ----------------------------------------------------------------------------
def _head_kernel_lane_dense(x_ref, p_ref, o_ref, *, d_in):
    # x_ref: (Bt, D_in)
    # p_ref: (D_out, D_in + 2) = [ W | bias | max_action ]  (torch W layout)
    # o_ref: (D_out, Bt)  -- batch on the 128-lane axis => lane-dense stores.
    x = x_ref[...]
    w = p_ref[:, :d_in]                    # (D_out, D_in)
    b = p_ref[:, d_in:d_in + 1]            # (D_out, 1)
    m = p_ref[:, d_in + 1:d_in + 2]        # (D_out, 1)
    # 'od,bd->ob': contract D_in of both operands; f32 MXU accumulation.
    z = jax.lax.dot_general(w, x, (((1,), (1,)), ((), ())),
                            preferred_element_type=jnp.float32)
    o_ref[...] = (jnp.tanh(z + b) * m).astype(o_ref.dtype)


def _head_kernel_module_layout(x_ref, p_ref, o_ref, *, d_in):
    # x_ref: (Bt, D_in)
    # p_ref: (D_in + 2, D_out) = [ W^T ; bias ; max_action ]
    # o_ref: (Bt, D_out)  -- exact torch layout; the narrow (4-lane) stores are
    # inherent to this layout (prefer lane_dense_out=True or trunk fusion).
    x = x_ref[...]
    w_t = p_ref[:d_in, :]                  # (D_in, D_out)
    b = p_ref[d_in:d_in + 1, :]            # (1, D_out)
    m = p_ref[d_in + 1:d_in + 2, :]        # (1, D_out)
    z = jnp.dot(x, w_t, preferred_element_type=jnp.float32)
    o_ref[...] = (jnp.tanh(z + b) * m).astype(o_ref.dtype)


# ----------------------------------------------------------------------------
# Parameter packing (one-time, at init -- NOT in the per-forward hot path)
# ----------------------------------------------------------------------------
def pack_params(weight, bias, max_action, *, lane_dense_out=False):
    """Pack W (torch (D_out, D_in) layout), bias and max_action into ONE array.

    Returns (D_out, D_in + 2) if lane_dense_out else (D_in + 2, D_out).
    """
    w = jnp.asarray(weight, jnp.float32)                    # (D_out, D_in)
    b = jnp.asarray(bias, jnp.float32).reshape(-1, 1)       # (D_out, 1)
    m = jnp.asarray(max_action, jnp.float32).reshape(-1, 1)  # (D_out, 1)
    p = jnp.concatenate([w, b, m], axis=1)                  # (D_out, D_in + 2)
    return p if lane_dense_out else p.T


# ----------------------------------------------------------------------------
# Forward wrapper
# ----------------------------------------------------------------------------
def deterministic_action_head(x, params, *, lane_dense_out=False, block_b=None):
    """tanh(x @ W.T + bias) * max_action.

    Args:
      x:      (B, D_in) activations.
      params: packed parameters from pack_params(..., lane_dense_out=...).
      lane_dense_out:
        False (default): returns (B, D_out), bit-compatible with the torch
          module's output layout.
        True  (recommended): returns (D_out, B). Batch lives on the lane axis,
          so the kernel's output stores and HBM writeback are lane-dense --
          use this layout whenever the consumer can accept it.
      block_b: optional batch tile (multiple of 128). None = auto: grid-less
        whenever the footprint fits the VMEM budget, else a large tile
        (<= 32768 rows) so grid-step overhead is amortized.
    """
    B, D_in = x.shape
    itemsize = x.dtype.itemsize

    if lane_dense_out:
        assert params.ndim == 2 and params.shape[1] == D_in + 2, \
            "params must be pack_params(..., lane_dense_out=True)"
        D_out = params.shape[0]
        kernel = functools.partial(_head_kernel_lane_dense, d_in=D_in)
        out_sds = jax.ShapeDtypeStruct((D_out, B), x.dtype)
    else:
        assert params.ndim == 2 and params.shape[0] == D_in + 2, \
            "params must be pack_params(..., lane_dense_out=False)"
        D_out = params.shape[1]
        kernel = functools.partial(_head_kernel_module_layout, d_in=D_in)
        out_sds = jax.ShapeDtypeStruct((B, D_out), x.dtype)

    def _rows_bytes(rows):
        xb = _padded_block_bytes(rows, D_in, itemsize)
        if lane_dense_out:
            ob = _padded_block_bytes(D_out, rows, itemsize)
        else:
            ob = _padded_block_bytes(rows, D_out, itemsize)
        return xb + ob

    params_bytes = 2 * _padded_block_bytes(params.shape[0], params.shape[1],
                                           params.dtype.itemsize)

    if block_b is not None:
        # Multiple of 128 covers the lane tile of the lane-dense output AND the
        # sublane packing of f32 (8) / bf16 (16) / int8 (32) batch tiles.
        assert block_b % 128 == 0, "block_b must be a multiple of 128"
    else:
        if _rows_bytes(B) + params_bytes > _VMEM_BUDGET_BYTES:
            # Large tiles amortize the ~0.35us per-grid-step overhead; keep the
            # double-buffered (x, out) footprint inside the budget.
            per_row2 = 2 * (_rows_bytes(128) // 128)
            bb = (_VMEM_BUDGET_BYTES - params_bytes) // per_row2
            block_b = max(128, min(32768, (bb // 128) * 128))

    if block_b is None or block_b >= B:
        # Grid-less path: no grid loop, no index maps, no double-buffer
        # machinery; every operand is a single full-array VMEM block.
        vmem = pl.BlockSpec(memory_space=pltpu.MemorySpace.VMEM)
        return pl.pallas_call(
            kernel,
            out_shape=out_sds,
            in_specs=[vmem, vmem],
            out_specs=vmem,
        )(x, params)

    steps = pl.cdiv(B, block_b)
    # Megacore split only when there are several nontrivial steps; this kernel
    # is overhead/DMA-bound, so tiny grids stay sequential ("parallel" vs
    # "arbitrary" is a measured no-op on single-TC chips anyway).
    sem = ("parallel",) if steps >= 8 else ("arbitrary",)

    if lane_dense_out:
        out_spec = pl.BlockSpec((D_out, block_b), lambda i: (0, i))
    else:
        out_spec = pl.BlockSpec((block_b, D_out), lambda i: (i, 0))

    return pl.pallas_call(
        kernel,
        out_shape=out_sds,
        grid=(steps,),
        in_specs=[
            pl.BlockSpec((block_b, D_in), lambda i: (i, 0)),   # batch tile of x
            pl.BlockSpec(params.shape, lambda i: (0, 0)),      # VMEM-resident params
        ],
        out_specs=out_spec,
        compiler_params=pltpu.CompilerParams(dimension_semantics=sem),
    )(x, params)


# ----------------------------------------------------------------------------
# Deterministic orthogonal init (mimics reset_weights(): orthogonal_, gain=0.01)
# ----------------------------------------------------------------------------
def _orthogonal_init(key, shape, gain):
    rows, cols = shape
    n = max(rows, cols)
    a = jax.random.normal(key, (n, n), dtype=jnp.float32)
    q, r = jnp.linalg.qr(a)
    d = jnp.diag(r)
    q = q * jnp.where(d == 0, 1.0, jnp.sign(d))
    return gain * q[:rows, :cols]


if __name__ == "__main__":
    # Shapes consistent with the module: batch=8, input_dim=32, action_dim=4.
    B, D_IN, D_OUT = 8, 32, 4

    key = jax.random.PRNGKey(0)
    k_x, k_w, k_x2 = jax.random.split(key, 3)

    weight = _orthogonal_init(k_w, (D_OUT, D_IN), gain=0.01)   # torch layout
    bias = jnp.zeros((D_OUT,), dtype=jnp.float32)
    max_action = jnp.full((D_OUT,), 2.0, dtype=jnp.float32)    # action_space.high

    # One-time packing (init-time, outside the per-forward hot path).
    params_bd = pack_params(weight, bias, max_action, lane_dense_out=False)
    params_db = pack_params(weight, bias, max_action, lane_dense_out=True)

    # --- small / default (grid-less) paths ---
    x = jax.random.normal(k_x, (B, D_IN), dtype=jnp.float32)
    ref = jnp.tanh(x @ weight.T + bias) * max_action

    out_bd = deterministic_action_head(x, params_bd)                       # (B, D_out)
    out_db = deterministic_action_head(x, params_db, lane_dense_out=True)  # (D_out, B)
    out_bd = jax.block_until_ready(out_bd)
    out_db = jax.block_until_ready(out_db)
    np.testing.assert_allclose(np.asarray(out_bd), np.asarray(ref),
                               rtol=1e-5, atol=1e-5)
    np.testing.assert_allclose(np.asarray(out_db).T, np.asarray(ref),
                               rtol=1e-5, atol=1e-5)

    # --- tiled paths (block_b forced small ONLY to exercise the grid code
    #     path; the auto policy would run these grid-less at this size) ---
    B2, BLK = 1024, 128
    x2 = jax.random.normal(k_x2, (B2, D_IN), dtype=jnp.float32)
    ref2 = jnp.tanh(x2 @ weight.T + bias) * max_action

    out2_db = deterministic_action_head(x2, params_db, lane_dense_out=True,
                                        block_b=BLK)
    out2_bd = deterministic_action_head(x2, params_bd, block_b=BLK)
    out2_db = jax.block_until_ready(out2_db)
    out2_bd = jax.block_until_ready(out2_bd)
    np.testing.assert_allclose(np.asarray(out2_db).T, np.asarray(ref2),
                               rtol=1e-5, atol=1e-5)
    np.testing.assert_allclose(np.asarray(out2_bd), np.asarray(ref2),
                               rtol=1e-5, atol=1e-5)

    print("KERNEL_OK")
</pallas_src>

<mosaic_0001>
module attributes {stable_mosaic.version = 11 : i64} {
  func.func @_head_kernel_module_layout(%arg0: memref<8x32xf32, #tpu.memory_space<vmem>>, %arg1: memref<34x4xf32, #tpu.memory_space<vmem>>, %arg2: memref<8x4xf32, #tpu.memory_space<vmem>>) attributes {dimension_semantics = [], scalar_prefetch = 0 : i64, scratch_operands = 0 : i64, tpu.core_type = #tpu.core_type<tc>} {
    %c0 = arith.constant 0 : index
    %c0_0 = arith.constant 0 : index
    %0 = vector.load %arg0[%c0, %c0_0] : memref<8x32xf32, #tpu.memory_space<vmem>>, vector<8x32xf32>
    %c0_1 = arith.constant 0 : index
    %c0_2 = arith.constant 0 : index
    %1 = vector.load %arg1[%c0_1, %c0_2] : memref<34x4xf32, #tpu.memory_space<vmem>>, vector<32x4xf32>
    %c32 = arith.constant 32 : index
    %c0_3 = arith.constant 0 : index
    %2 = vector.load %arg1[%c32, %c0_3] : memref<34x4xf32, #tpu.memory_space<vmem>>, vector<1x4xf32>
    %c33 = arith.constant 33 : index
    %c0_4 = arith.constant 0 : index
    %3 = vector.load %arg1[%c33, %c0_4] : memref<34x4xf32, #tpu.memory_space<vmem>>, vector<1x4xf32>
    %cst = arith.constant dense<0.000000e+00> : vector<8x4xf32>
    %4 = tpu.matmul %0, %1, %cst {dimension_numbers = #tpu.dot_dimension_numbers<[1], [0], [0], [1], [0, 0, 1, 1], [], []>} : vector<8x32xf32>, vector<32x4xf32>, vector<8x4xf32> -> vector<8x4xf32>
    %5 = vector.broadcast %2 : vector<1x4xf32> to vector<8x4xf32>
    %6 = arith.addf %4, %5 : vector<8x4xf32>
    %7 = math.tanh %6 : vector<8x4xf32>
    %8 = vector.broadcast %3 : vector<1x4xf32> to vector<8x4xf32>
    %9 = arith.mulf %7, %8 : vector<8x4xf32>
    %c0_5 = arith.constant 0 : index
    %c0_6 = arith.constant 0 : index
    %10 = vector.load %arg2[%c0_5, %c0_6] : memref<8x4xf32, #tpu.memory_space<vmem>>, vector<8x4xf32>
    tpu.vector_store %arg2[%c0_5, %c0_6], %9 {strides = array<i32>} : memref<8x4xf32, #tpu.memory_space<vmem>>, vector<8x4xf32>,
    return
  }
}

</mosaic_0001>

<llo_original>
// kernel: tpu_custom_call.1
$region0: #{tpu_custom_call.1}
  #allocation0 [shape = 'u32[]', space=smem, size = 0x4, offset = 0x4, fixed_abs, tag = 'smem constant byte address 0x4 - core index']
  #allocation1 [shape = 'u32[144,128]{1,0:T(1,128)}', space=vmem, size = 0x12000, scoped, tag = 'internal scratch']
  %s0 = inlined_call_operand.vmem [shape: f32[8,32], index: 0, kind: input, shape index: {}]
  %s1 = inlined_call_operand.vmem [shape: f32[34,4], index: 1, kind: input, shape index: {}]
  %s2 = inlined_call_operand.vmem [shape: f32[8,4], index: 2, kind: output, shape index: {}]
  %s3 = sld [smem:[#allocation0]]
  $region18: #{tpu_custom_call.1} parent=0
    _
  %s5 = ssub.s32 1, %s3
  %s6 = scalar_select 0, %s5, %s3
  // Predicated region
  $region2: #{tpu_custom_call.1} parent=0 // pred_check
    _
  $region3: #{tpu_custom_call.1} parent=0 // pred_check_branch
    %8 = sbr.rel (0) target = $region5
  $region4: #{tpu_custom_call.1} parent=0 // pred_region
    _
  $region5: #{tpu_custom_call.1} parent=0 // pred_fallthru
    _
  // Predicated region
  $region6: #{tpu_custom_call.1} parent=0 // pred_check
    _
  $region7: #{tpu_custom_call.1} parent=0 // pred_check_branch
    %10 = sbr.rel (0) target = $region9
  $region8: #{tpu_custom_call.1} parent=0 // pred_region
    _
  $region9: #{tpu_custom_call.1} parent=0 // pred_fallthru
    _
  %v11 = vld [vmem:[%s0] sm:$0xff]
  %v12 = vld [vmem:[%s1] sm:$0xff]
  %v13 = vld [vmem:[%s1 + $0x8] sm:$0xff]
  %v14 = vld [vmem:[%s1 + $0x10] sm:$0xff]
  %v15 = vld [vmem:[%s1 + $0x18] sm:$0xff]
  %v16 = vld [vmem:[%s1 + $0x20] sm:$0x1]
  %v17 = vld [vmem:[%s1 + $0x21] sm:$0x1]
  %v18 = vlaneseq
  %v19 = vshrl.u32 %v18, 7
  %v20 = vsub.s32 0, %v19
  %v21 = vrot.slane %v16, %v20
  %vm22 = vcmask 261120
  %v24 = vsel %vm22, %v11, 0
  %26 = vmatprep.subr.mxu0 0.0
  %27 = vmatpush1.msra.mxu0 0.0
  %28 = vmatprep.subr.mxu0 0.0
  %29 = vmatpush1.msra.mxu0 0.0
  %30 = vmatprep.subr.mxu0 0.0
  %31 = vmatpush1.msra.mxu0 0.0
  %32 = vmatprep.subr.mxu0 0.0
  %33 = vmatpush1.msra.mxu0 0.0
  %34 = vmatprep.subr.mxu0 0.0
  %35 = vmatpush1.msra.mxu0 0.0
  %36 = vmatprep.subr.mxu0 0.0
  %37 = vmatpush1.msra.mxu0 0.0
  %38 = vmatprep.subr.mxu0 0.0
  %39 = vmatpush1.msra.mxu0 0.0
  %40 = vmatprep.subr.mxu0 0.0
  %41 = vmatpush1.msra.mxu0 0.0
  %42 = vmatprep.subr.mxu0 0.0
  %43 = vmatpush1.msra.mxu0 0.0
  %44 = vmatprep.subr.mxu0 0.0
  %45 = vmatpush1.msra.mxu0 0.0
  %46 = vmatprep.subr.mxu0 0.0
  %47 = vmatpush1.msra.mxu0 0.0
  %48 = vmatprep.subr.mxu0 0.0
  %49 = vmatpush1.msra.mxu0 0.0
  %50 = vmatprep.subr.mxu0 0.0
  %51 = vmatpush1.msra.mxu0 %v15
  %52 = vmatprep.subr.mxu0 0.0
  %53 = vmatpush1.msra.mxu0 %v14
  %54 = vmatprep.subr.mxu0 0.0
  %55 = vmatpush1.msra.mxu0 %v13
  %56 = vmatprep.subr.mxu0 0.0
  %57 = vmatpush1.msra.mxu0 %v12
  %58 = vmatprep.subr.mxu0 0.0
  %59 = vmatpush2.msra.mxu0 0.0
  %60 = vmatprep.subr.mxu0 0.0
  %61 = vmatpush2.msra.mxu0 0.0
  %62 = vmatprep.subr.mxu0 0.0
  %63 = vmatpush2.msra.mxu0 0.0
  %64 = vmatprep.subr.mxu0 0.0
  %65 = vmatpush2.msra.mxu0 0.0
  %66 = vmatprep.subr.mxu0 0.0
  %67 = vmatpush2.msra.mxu0 0.0
  %68 = vmatprep.subr.mxu0 0.0
  %69 = vmatpush2.msra.mxu0 0.0
  %70 = vmatprep.subr.mxu0 0.0
  %71 = vmatpush2.msra.mxu0 0.0
  %72 = vmatprep.subr.mxu0 0.0
  %73 = vmatpush2.msra.mxu0 0.0
  %74 = vmatprep.subr.mxu0 0.0
  %75 = vmatpush2.msra.mxu0 0.0
  %76 = vmatprep.subr.mxu0 0.0
  %77 = vmatpush2.msra.mxu0 0.0
  %78 = vmatprep.subr.mxu0 0.0
  %79 = vmatpush2.msra.mxu0 0.0
  %80 = vmatprep.subr.mxu0 0.0
  %81 = vmatpush2.msra.mxu0 0.0
  %82 = vmatprep.subr.mxu0 0.0
  %83 = vmatpush2.msra.mxu0 0.0
  %84 = vmatprep.subr.mxu0 0.0
  %85 = vmatpush2.msra.mxu0 0.0
  %86 = vmatprep.subr.mxu0 0.0
  %87 = vmatpush2.msra.mxu0 0.0
  %88 = vmatprep.subr.mxu0 0.0
  %89 = vmatpush2.msra.mxu0 0.0
  %90 = vmatprep.mubr.f32.mxu0 0.0
  %91 = vmatmul.mubr.f32.gmra.mxu0 %v24
  %v92 = vpop.f32.mrf.mxu0
  %v93 = vadd.f32 %v21, %v92
  %v94 = vpop.f32.mrf.mxu0
  %95 = vdwg.mxu0
  %v96 = vtanh.pop %v93
  %v97 = vlaneseq
  %v98 = vshrl.u32 %v97, 7
  %v99 = vsub.s32 0, %v98
  %v100 = vrot.slane %v17, %v99
  %v101 = vmul.f32 %v96, %v100
  %vm102 = vcmask 31744
  %103 = vst.msk [vmem:[%s2] sm:$0xff] %vm102, %v101
  // Predicated region
  $region10: #{tpu_custom_call.1} parent=0 // pred_check
    _
  $region11: #{tpu_custom_call.1} parent=0 // pred_check_branch
    %105 = sbr.rel (0) target = $region13
  $region12: #{tpu_custom_call.1} parent=0 // pred_region
    _
  $region13: #{tpu_custom_call.1} parent=0 // pred_fallthru
    _
  // Predicated region
  $region14: #{tpu_custom_call.1} parent=0 // pred_check
    _
  $region15: #{tpu_custom_call.1} parent=0 // pred_check_branch
    %107 = sbr.rel (0) target = $region17
  $region16: #{tpu_custom_call.1} parent=0 // pred_region
    _
  $region17: #{tpu_custom_call.1} parent=0 // pred_fallthru
    _

</llo_original>
